<compile_context>
chip_gen: v6e
topology: v6e:2x2x1
jax: 0.10.0
libtpu: 0.0.40
codegen_flags: <defaults>
</compile_context>

<pallas_src>
import functools
import math

import jax
import jax.numpy as jnp
import numpy as np
from jax import lax
from jax.experimental import pallas as pl
from jax.experimental.pallas import tpu as pltpu

_VMEM_LIMIT_BYTES = 48 * 1024 * 1024


def _pick_tile(n, target, align=8):
    """Largest multiple of `align` <= target that evenly divides n, else n."""
    t = min(target, n)
    t = (t // align) * align
    while t >= align:
        if n % t == 0:
            return t
        t -= align
    return n  # full extent is always a legal block size


# --------------------------------------------------------------------------
# Linear kernel: o = x @ W^T + b   (W in torch nn.Linear layout: (out, in))
# --------------------------------------------------------------------------
def _linear_kernel(x_ref, w_ref, b_ref, o_ref):
    acc = lax.dot_general(
        x_ref[...], w_ref[...],
        dimension_numbers=(((1,), (1,)), ((), ())),   # contract last dims
        preferred_element_type=jnp.float32)
    o_ref[...] = (acc + b_ref[...].astype(jnp.float32)).astype(o_ref.dtype)


def _linear(x2d, w, b, *, tile_m=256):
    """x2d: (M, K); w: (N, K) torch layout; b: (N,) -> (M, N)."""
    M, K = x2d.shape
    N = w.shape[0]
    tm = _pick_tile(M, tile_m)
    b2d = b.reshape(1, N)
    return pl.pallas_call(
        _linear_kernel,
        out_shape=jax.ShapeDtypeStruct((M, N), x2d.dtype),
        grid_spec=pltpu.PrefetchScalarGridSpec(
            num_scalar_prefetch=0,
            grid=(M // tm,),
            in_specs=[
                pl.BlockSpec((tm, K), lambda i: (i, 0)),   # activations
                pl.BlockSpec((N, K), lambda i: (0, 0)),    # weight (resident)
                pl.BlockSpec((1, N), lambda i: (0, 0)),    # bias (resident)
            ],
            out_specs=pl.BlockSpec((tm, N), lambda i: (i, 0)),
        ),
        compiler_params=pltpu.CompilerParams(
            dimension_semantics=("parallel",),
            vmem_limit_bytes=_VMEM_LIMIT_BYTES),
    )(x2d, w, b2d)


# --------------------------------------------------------------------------
# Flash attention kernel (online softmax, heads batched per block)
# --------------------------------------------------------------------------
def _flash_kernel(q_ref, k_ref, v_ref, o_ref, m_sc, l_sc, acc_sc, *, scale):
    """Blocks: q (1,H,TQ,dh), k/v (1,H,TK,dh), out (1,H,TQ,dh)."""
    kv = pl.program_id(2)

    @pl.when(kv == 0)
    def _init():
        m_sc[...] = jnp.full(m_sc.shape, -jnp.inf, m_sc.dtype)
        l_sc[...] = jnp.zeros(l_sc.shape, l_sc.dtype)
        acc_sc[...] = jnp.zeros(acc_sc.shape, acc_sc.dtype)

    # Fold the 1/sqrt(dh) scale into q (O(TQ*dh) instead of O(TQ*TK)).
    q = q_ref[0] * scale                                      # (H, TQ, dh)
    # Scores for all heads in one batched contraction (no explicit k^T).
    s = jnp.einsum('hqd,hkd->hqk', q, k_ref[0],
                   preferred_element_type=jnp.float32)        # (H, TQ, TK) f32

    m_prev = m_sc[...]                                        # (H, TQ, 1)
    m_new = jnp.maximum(m_prev, jnp.max(s, axis=-1, keepdims=True))
    alpha = jnp.exp(m_prev - m_new)                           # rescale factor
    p = jnp.exp(s - m_new)                                    # f32 softmax num

    l_sc[...] = alpha * l_sc[...] + jnp.sum(p, axis=-1, keepdims=True)
    acc_sc[...] = alpha * acc_sc[...] + jnp.einsum(
        'hqk,hkd->hqd', p.astype(v_ref.dtype), v_ref[0],
        preferred_element_type=jnp.float32)
    m_sc[...] = m_new

    @pl.when(kv == pl.num_programs(2) - 1)
    def _finalize():
        inv_l = pl.reciprocal(l_sc[...], approx=True)         # EUP slot
        o_ref[0] = (acc_sc[...] * inv_l).astype(o_ref.dtype)


def _flash_attention(q, k, v, *, scale, tile_q=128, tile_k=256):
    """q, k, v: (B, H, S, dh) -> (B, H, S, dh)."""
    B, H, S, dh = q.shape
    tq = _pick_tile(S, tile_q)
    tk = _pick_tile(S, tile_k)
    return pl.pallas_call(
        functools.partial(_flash_kernel, scale=scale),
        out_shape=jax.ShapeDtypeStruct((B, H, S, dh), q.dtype),
        grid_spec=pltpu.PrefetchScalarGridSpec(
            num_scalar_prefetch=0,
            grid=(B, S // tq, S // tk),
            in_specs=[
                pl.BlockSpec((1, H, tq, dh), lambda b, qi, ki: (b, 0, qi, 0)),
                pl.BlockSpec((1, H, tk, dh), lambda b, qi, ki: (b, 0, ki, 0)),
                pl.BlockSpec((1, H, tk, dh), lambda b, qi, ki: (b, 0, ki, 0)),
            ],
            out_specs=pl.BlockSpec((1, H, tq, dh),
                                   lambda b, qi, ki: (b, 0, qi, 0)),
            scratch_shapes=[
                pltpu.VMEM((H, tq, 1), jnp.float32),    # running max m
                pltpu.VMEM((H, tq, 1), jnp.float32),    # running denom l
                pltpu.VMEM((H, tq, dh), jnp.float32),   # output accumulator
            ],
        ),
        compiler_params=pltpu.CompilerParams(
            dimension_semantics=("parallel", "parallel", "arbitrary"),
            vmem_limit_bytes=_VMEM_LIMIT_BYTES),
    )(q, k, v)


# --------------------------------------------------------------------------
# Full SelfAttention forward
# --------------------------------------------------------------------------
def self_attention(x, w_in, b_in, w_out, b_out, num_heads, causal_mask=False):
    """x: (B, S, D); w_in: (3D, D) torch layout; w_out: (D, D); biases 1-D.

    `causal_mask` is accepted for API parity but is a no-op, matching the
    reference module (its masked_fill result is discarded).
    """
    del causal_mask
    B, S, D = x.shape
    H = num_heads
    dh = D // H
    scale = 1.0 / math.sqrt(dh)

    # Input projection: (B*S, D) @ W_in^T + b_in -> (B*S, 3D)
    x2d = x.reshape(B * S, D)
    qkv = _linear(x2d, w_in, b_in)

    # Split heads (cheap XLA-level relayout; O(S*D) vs O(S^2*D) attention).
    qkv = qkv.reshape(B, S, 3, H, dh).transpose(2, 0, 3, 1, 4)  # (3,B,H,S,dh)
    q, k, v = qkv[0], qkv[1], qkv[2]

    # Flash attention over (B, H, S, dh).
    attn = _flash_attention(q, k, v, scale=scale)

    # Merge heads and apply output projection.
    attn = attn.transpose(0, 2, 1, 3).reshape(B * S, D)          # (B*S, D)
    out = _linear(attn, w_out, b_out)
    return out.reshape(B, S, D)


# --------------------------------------------------------------------------
# Plain-JAX reference mirroring the PyTorch forward exactly
# --------------------------------------------------------------------------
def self_attention_ref(x, w_in, b_in, w_out, b_out, num_heads):
    B, S, D = x.shape
    dh = D // num_heads
    qkv = jnp.einsum('bsd,ed->bse', x, w_in) + b_in          # (B, S, 3D)
    q, k, v = jnp.split(qkv, 3, axis=-1)

    def heads(t):  # (B, S, D) -> (B, H, S, dh)
        return t.reshape(B, S, num_heads, dh).transpose(0, 2, 1, 3)

    q, k, v = heads(q), heads(k), heads(v)
    w = jnp.einsum('bhqd,bhkd->bhqk', q, k) / math.sqrt(dh)
    w = jax.nn.softmax(w, axis=-1)
    o = jnp.einsum('bhqk,bhkd->bhqd', w, v)
    o = o.transpose(0, 2, 1, 3).reshape(B, S, D)
    return jnp.einsum('bsd,ed->bse', o, w_out) + b_out


if __name__ == "__main__":
    B, S, D, H = 2, 8, 32, 4

    key = jax.random.PRNGKey(0)
    kx, k1, k2, k3, k4 = jax.random.split(key, 5)

    x = jax.random.normal(kx, (B, S, D), dtype=jnp.float32)
    # nn.Linear(d_embed, 3*d_embed): weight (3D, D), bias (3D,)
    w_in = jax.random.normal(k1, (3 * D, D), dtype=jnp.float32) * 0.05
    b_in = jax.random.normal(k2, (3 * D,), dtype=jnp.float32) * 0.05
    # nn.Linear(d_embed, d_embed): weight (D, D), bias (D,)
    w_out = jax.random.normal(k3, (D, D), dtype=jnp.float32) * 0.05
    b_out = jax.random.normal(k4, (D,), dtype=jnp.float32) * 0.05

    out = self_attention(x, w_in, b_in, w_out, b_out, num_heads=H)
    out = jax.block_until_ready(out)

    ref = self_attention_ref(x, w_in, b_in, w_out, b_out, num_heads=H)
    # Tolerance accounts for pl.reciprocal(approx=True) in the softmax
    # denominator (relative error ~1e-4).
    np.testing.assert_allclose(np.asarray(out), np.asarray(ref),
                               rtol=1e-3, atol=1e-3)

    print("KERNEL_OK")
</pallas_src>

<mosaic_0001>
module attributes {stable_mosaic.version = 11 : i64} {
  func.func @_linear_kernel(%arg0: i32, %arg1: memref<16x32xf32, #tpu.memory_space<vmem>>, %arg2: memref<96x32xf32, #tpu.memory_space<vmem>>, %arg3: memref<1x96xf32, #tpu.memory_space<vmem>>, %arg4: memref<16x96xf32, #tpu.memory_space<vmem>>) attributes {dimension_semantics = [#tpu.dimension_semantics<parallel>], iteration_bounds = array<i64: 1>, scalar_prefetch = 0 : i64, scratch_operands = 0 : i64, tpu.core_type = #tpu.core_type<tc>, window_params = [{transform_indices = @transform_0, window_bounds = array<i64: 16, 32>}, {pipeline_mode = #tpu.pipeline_mode<synchronous>, transform_indices = @transform_1, window_bounds = array<i64: 96, 32>}, {pipeline_mode = #tpu.pipeline_mode<synchronous>, transform_indices = @transform_2, window_bounds = array<i64: 1, 96>}, {transform_indices = @transform_3, window_bounds = array<i64: 16, 96>}]} {
    %c0 = arith.constant 0 : index
    %c0_0 = arith.constant 0 : index
    %0 = vector.load %arg1[%c0, %c0_0] : memref<16x32xf32, #tpu.memory_space<vmem>>, vector<16x32xf32>
    %c0_1 = arith.constant 0 : index
    %c0_2 = arith.constant 0 : index
    %1 = vector.load %arg2[%c0_1, %c0_2] : memref<96x32xf32, #tpu.memory_space<vmem>>, vector<96x32xf32>
    %cst = arith.constant dense<0.000000e+00> : vector<16x96xf32>
    %2 = tpu.matmul %0, %1, %cst {dimension_numbers = #tpu.dot_dimension_numbers<[1], [1], [0], [0], [0, 0, 1, 0], [], []>} : vector<16x32xf32>, vector<96x32xf32>, vector<16x96xf32> -> vector<16x96xf32>
    %c0_3 = arith.constant 0 : index
    %c0_4 = arith.constant 0 : index
    %3 = vector.load %arg3[%c0_3, %c0_4] : memref<1x96xf32, #tpu.memory_space<vmem>>, vector<1x96xf32>
    %4 = vector.broadcast %3 : vector<1x96xf32> to vector<16x96xf32>
    %5 = arith.addf %2, %4 : vector<16x96xf32>
    %c0_5 = arith.constant 0 : index
    %c0_6 = arith.constant 0 : index
    %6 = vector.load %arg4[%c0_5, %c0_6] : memref<16x96xf32, #tpu.memory_space<vmem>>, vector<16x96xf32>
    tpu.vector_store %arg4[%c0_5, %c0_6], %5 {strides = array<i32>} : memref<16x96xf32, #tpu.memory_space<vmem>>, vector<16x96xf32>,
    return
  }
  func.func @transform_0(%arg0: i32) -> (i32, i32) {
    %c0_i32 = arith.constant 0 : i32
    %c0_i32_0 = arith.constant 0 : i32
    return %arg0, %c0_i32 : i32, i32
  }
  func.func @transform_1(%arg0: i32) -> (i32, i32) {
    %c0_i32 = arith.constant 0 : i32
    %c0_i32_0 = arith.constant 0 : i32
    %c0_i32_1 = arith.constant 0 : i32
    return %c0_i32, %c0_i32_0 : i32, i32
  }
  func.func @transform_2(%arg0: i32) -> (i32, i32) {
    %c0_i32 = arith.constant 0 : i32
    %c0_i32_0 = arith.constant 0 : i32
    %c0_i32_1 = arith.constant 0 : i32
    return %c0_i32, %c0_i32_0 : i32, i32
  }
  func.func @transform_3(%arg0: i32) -> (i32, i32) {
    %c0_i32 = arith.constant 0 : i32
    %c0_i32_0 = arith.constant 0 : i32
    return %arg0, %c0_i32 : i32, i32
  }
}

</mosaic_0001>

<llo_original>
// kernel: tpu_custom_call.1
$region0: #{tpu_custom_call.1}
  #allocation0 [shape = 'u32[]', space=smem, size = 0x4, offset = 0x4, fixed_abs, tag = 'smem constant byte address 0x4 - core index']
  #allocation1 [shape = 'u32[144,128]{1,0:T(1,128)}', space=vmem, size = 0x12000, scoped, tag = 'internal scratch']
  %s0 = inlined_call_operand.vmem [shape: f32[16,32], index: 0, kind: input, shape index: {}]
  %s1 = inlined_call_operand.vmem [shape: f32[96,32], index: 1, kind: input, shape index: {}]
  %s2 = inlined_call_operand.vmem [shape: f32[1,96], index: 2, kind: input, shape index: {}]
  %s3 = inlined_call_operand.hbm [shape: f32[16,96], index: 3, kind: output, shape index: {}]
  %s4 = sld [smem:[#allocation0]]
  $region22: #{tpu_custom_call.1} parent=0
    _
  %s6 = ssub.s32 1, %s4
  %s7 = scalar_select 0, %s6, %s4
  $region1: #{tpu_custom_call.1} parent=0
    #allocation2 [shape = 'u8[8192]{0}', space=vmem, size = 0x2000, scoped, tag = 'output window, operand 0, single buffered']
    #allocation3 [shape = 's32[1]{0}', space=sflag, size = 0x4, scoped, tag = 'scoped memory for tpu_custom_call.1']
    %8 = vsyncpa [#allocation3], 0
    // Predicated region
    $region2: #{tpu_custom_call.1} parent=1 // pred_check
      _
    $region3: #{tpu_custom_call.1} parent=1 // pred_check_branch
      %10 = sbr.rel (0) target = $region5
    $region4: #{tpu_custom_call.1} parent=1 // pred_region
      _
    $region5: #{tpu_custom_call.1} parent=1 // pred_fallthru
      _
    // Predicated region
    $region6: #{tpu_custom_call.1} parent=1 // pred_check
      _
    $region7: #{tpu_custom_call.1} parent=1 // pred_check_branch
      %12 = sbr.rel (0) target = $region9
    $region8: #{tpu_custom_call.1} parent=1 // pred_region
      _
    $region9: #{tpu_custom_call.1} parent=1 // pred_fallthru
      _
    // Predicated region
    $region10: #{tpu_custom_call.1} parent=1 // pred_check
      _
    $region11: #{tpu_custom_call.1} parent=1 // pred_check_branch
      %14 = sbr.rel (0) target = $region13
    $region12: #{tpu_custom_call.1} parent=1 // pred_region
      _
    $region13: #{tpu_custom_call.1} parent=1 // pred_fallthru
      _
    %v15 = vld [vmem:[%s0] sm:$0xff]
    %v16 = vld [vmem:[%s0 + $0x8] sm:$0xff]
    %v17 = vld [vmem:[%s1] sm:$0xff]
    %v18 = vld [vmem:[%s1 + $0x8] sm:$0xff]
    %v19 = vld [vmem:[%s1 + $0x10] sm:$0xff]
    %v20 = vld [vmem:[%s1 + $0x18] sm:$0xff]
    %v21 = vld [vmem:[%s1 + $0x20] sm:$0xff]
    %v22 = vld [vmem:[%s1 + $0x28] sm:$0xff]
    %v23 = vld [vmem:[%s1 + $0x30] sm:$0xff]
    %v24 = vld [vmem:[%s1 + $0x38] sm:$0xff]
    %v25 = vld [vmem:[%s1 + $0x40] sm:$0xff]
    %v26 = vld [vmem:[%s1 + $0x48] sm:$0xff]
    %v27 = vld [vmem:[%s1 + $0x50] sm:$0xff]
    %v28 = vld [vmem:[%s1 + $0x58] sm:$0xff]
    %v29 = vld [vmem:[%s2] sm:$0x1]
    %v31 = vlaneseq
    %v32 = vshrl.u32 %v31, 7
    %v33 = vsub.s32 0, %v32
    %v34 = vrot.slane %v29, %v33
    %vm36 = vcmask 261120
    %v38 = vsel %vm36, %v15, 0
    %v41 = vsel %vm36, %v16, 0
    %v44 = vsel %vm36, %v17, 0
    %v47 = vsel %vm36, %v18, 0
    %v50 = vsel %vm36, %v19, 0
    %v53 = vsel %vm36, %v20, 0
    %v56 = vsel %vm36, %v21, 0
    %v59 = vsel %vm36, %v22, 0
    %v62 = vsel %vm36, %v23, 0
    %v65 = vsel %vm36, %v24, 0
    %v68 = vsel %vm36, %v25, 0
    %v71 = vsel %vm36, %v26, 0
    %v74 = vsel %vm36, %v27, 0
    %v77 = vsel %vm36, %v28, 0
    %79 = vmatprep.subr.mxu0 0.0
    %80 = vmatpush1.xpose.msra.mxu0 0.0
    %81 = vmatprep.subr.mxu0 0.0
    %82 = vmatpush1.xpose.msra.mxu0 0.0
    %83 = vmatprep.subr.mxu0 0.0
    %84 = vmatpush1.xpose.msra.mxu0 0.0
    %85 = vmatprep.subr.mxu0 0.0
    %86 = vmatpush1.xpose.msra.mxu0 0.0
    %87 = vmatprep.subr.mxu0 0.0
    %88 = vmatpush1.xpose.msra.mxu0 %v77
    %89 = vmatprep.subr.mxu0 0.0
    %90 = vmatpush1.xpose.msra.mxu0 %v74
    %91 = vmatprep.subr.mxu0 0.0
    %92 = vmatpush1.xpose.msra.mxu0 %v71
    %93 = vmatprep.subr.mxu0 0.0
    %94 = vmatpush1.xpose.msra.mxu0 %v68
    %95 = vmatprep.subr.mxu0 0.0
    %96 = vmatpush1.xpose.msra.mxu0 %v65
    %97 = vmatprep.subr.mxu0 0.0
    %98 = vmatpush1.xpose.msra.mxu0 %v62
    %99 = vmatprep.subr.mxu0 0.0
    %100 = vmatpush1.xpose.msra.mxu0 %v59
    %101 = vmatprep.subr.mxu0 0.0
    %102 = vmatpush1.xpose.msra.mxu0 %v56
    %103 = vmatprep.subr.mxu0 0.0
    %104 = vmatpush1.xpose.msra.mxu0 %v53
    %105 = vmatprep.subr.mxu0 0.0
    %106 = vmatpush1.xpose.msra.mxu0 %v50
    %107 = vmatprep.subr.mxu0 0.0
    %108 = vmatpush1.xpose.msra.mxu0 %v47
    %109 = vmatprep.subr.mxu0 0.0
    %110 = vmatpush1.xpose.msra.mxu0 %v44
    %111 = vmatprep.subr.mxu0 0.0
    %112 = vmatpush2.xpose.msra.mxu0 0.0
    %113 = vmatprep.subr.mxu0 0.0
    %114 = vmatpush2.xpose.msra.mxu0 0.0
    %115 = vmatprep.subr.mxu0 0.0
    %116 = vmatpush2.xpose.msra.mxu0 0.0
    %117 = vmatprep.subr.mxu0 0.0
    %118 = vmatpush2.xpose.msra.mxu0 0.0
    %119 = vmatprep.subr.mxu0 0.0
    %120 = vmatpush2.xpose.msra.mxu0 0.0
    %121 = vmatprep.subr.mxu0 0.0
    %122 = vmatpush2.xpose.msra.mxu0 0.0
    %123 = vmatprep.subr.mxu0 0.0
    %124 = vmatpush2.xpose.msra.mxu0 0.0
    %125 = vmatprep.subr.mxu0 0.0
    %126 = vmatpush2.xpose.msra.mxu0 0.0
    %127 = vmatprep.subr.mxu0 0.0
    %128 = vmatpush2.xpose.msra.mxu0 0.0
    %129 = vmatprep.subr.mxu0 0.0
    %130 = vmatpush2.xpose.msra.mxu0 0.0
    %131 = vmatprep.subr.mxu0 0.0
    %132 = vmatpush2.xpose.msra.mxu0 0.0
    %133 = vmatprep.subr.mxu0 0.0
    %134 = vmatpush2.xpose.msra.mxu0 0.0
    %135 = vmatprep.subr.mxu0 0.0
    %136 = vmatpush2.xpose.msra.mxu0 0.0
    %137 = vmatprep.subr.mxu0 0.0
    %138 = vmatpush2.xpose.msra.mxu0 0.0
    %139 = vmatprep.subr.mxu0 0.0
    %140 = vmatpush2.xpose.msra.mxu0 0.0
    %141 = vmatprep.subr.mxu0 0.0
    %142 = vmatpush2.xpose.msra.mxu0 0.0
    %143 = vmatprep.mubr.f32.mxu0 0.0
    %144 = vmatmul.mubr.f32.gmra.mxu0 %v38
    %v145 = vpop.f32.mrf.mxu0
    %v146 = vadd.f32 %v34, %v145
    %v147 = vpop.f32.mrf.mxu0
    %148 = vmatprep.mubr.f32.mxu0 0.0
    %149 = vmatmul.mubr.f32.gmra.mxu0 %v41
    %v150 = vpop.f32.mrf.mxu0
    %v151 = vadd.f32 %v34, %v150
    %v152 = vpop.f32.mrf.mxu0
    %153 = vdwg.mxu0
    %vm154 = vcmask 785408
    %155 = vst.msk [vmem:[#allocation2] sm:$0xff] %vm154, %v146
    %156 = vst.msk [vmem:[#allocation2 + $0x8] sm:$0xff] %vm154, %v151
    // Predicated region
    $region14: #{tpu_custom_call.1} parent=1 // pred_check
      _
    $region15: #{tpu_custom_call.1} parent=1 // pred_check_branch
      %158 = sbr.rel (0) target = $region17
    $region16: #{tpu_custom_call.1} parent=1 // pred_region
      %s160 = ssub.s32 256, 256
      %161 = vsyncadd [#allocation3], %s160
      %s162 = sshll.u32 [#allocation2], 4
      %s163 = int_to_ptr.vmem [resolvable:$true] %s162
      %168 = dma.vmem_to_hbm [thread:$0]  %s163, 256, %s3, [#allocation3], 128, 128, 8
    $region17: #{tpu_custom_call.1} parent=1 // pred_fallthru
      _
    // Predicated region
    $region18: #{tpu_custom_call.1} parent=1 // pred_check
      _
    $region19: #{tpu_custom_call.1} parent=1 // pred_check_branch
      %170 = sbr.rel (0) target = $region21
    $region20: #{tpu_custom_call.1} parent=1 // pred_region
      %171 = dma.done [#allocation3], 256
    $region21: #{tpu_custom_call.1} parent=1 // pred_fallthru
      _
    %172 = vsyncpa [#allocation3], 1

</llo_original>
